<compile_context>
chip_gen: v5e
topology: v5e:2x2
jax: 0.10.0
libtpu: 0.0.40
codegen_flags: <defaults>
</compile_context>

<pallas_src>
import math

import jax
import jax.numpy as jnp
from jax.experimental import pallas as pl
from jax.experimental.pallas import tpu as pltpu


def _round_up(x: int, m: int) -> int:
    return ((x + m - 1) // m) * m


def _sage_kernel(a_ref, xt_ref, xrow_ref, w1_ref, w2_ref, b_ref, o_ref, acc_ref):
    # a_ref    : (TM, TK)   bf16  adjacency tile (row tile i, contraction tile k)
    # xt_ref   : (TK, Fg)   bf16  batch-folded features, trailing ones column
    # xrow_ref : (TM, Fg)   bf16  self features for this row tile (k-invariant)
    # w1_ref   : (Fg, Cpb)  bf16  block-diag self weights   (padded rows are 0)
    # w2_ref   : (Fg, Cpb)  bf16  block-diag neigh weights  (padded rows are 0)
    # b_ref    : (1,  Cpb)  f32   bias tiled across batch
    # o_ref    : (TM, Cpb)  f32   lane-dense output row tile (written at k==last)
    # acc_ref  : (TM, Fg)   f32   accumulator for A @ [X | 1] (persists over k)
    k = pl.program_id(1)

    @pl.when(k == 0)
    def _():
        acc_ref[...] = jnp.zeros_like(acc_ref)

    # Aggregation partial sum.  The trailing ones column of xt accumulates the
    # row degree in the last lane, for free, on the MXU.
    acc_ref[...] += jnp.dot(a_ref[...], xt_ref[...],
                            preferred_element_type=jnp.float32)

    @pl.when(k == pl.num_programs(1) - 1)
    def _():
        acc = acc_ref[...]                                    # (TM, Fg) f32
        deg = acc[:, -1:]                                     # row degree (exact)
        inv = pl.reciprocal(jnp.maximum(deg, 1.0), approx=True)
        agg = (acc * inv).astype(xt_ref.dtype)                # mean aggregation
        # concat([X, agg]) @ W  ==  X @ W1 + agg @ W2 ; the degree / zero-pad
        # lanes hit zero rows of W1/W2 and contribute nothing.
        h = jnp.dot(xrow_ref[...], w1_ref[...], preferred_element_type=jnp.float32)
        h = h + jnp.dot(agg, w2_ref[...], preferred_element_type=jnp.float32)
        o_ref[...] = (h + b_ref[...]).astype(o_ref.dtype)


def sage_conv(x, a, weight, bias, *, row_tile=256, k_tile=512):
    """GraphSAGE forward (concat=True, normalize=False, bias=True).

    x: (B, N, Cin) f32, a: (N, N) adjacency, weight: (2*Cin, Cout), bias: (Cout,)
    returns (B, N, Cout) f32.
    """
    B, N, Cin = x.shape
    Cout = weight.shape[1]
    out_dt = x.dtype
    cdt = jnp.bfloat16            # streaming/compute dtype; accumulation is f32

    Fa = B * Cin                  # batch folded into the feature (lane) axis
    if Fa > 128:
        # TODO(synk): for B*Cin > 128 the block-diagonal projection does O(B^2)
        # redundant MXU work; fold batch into the sublane (M) axis instead.
        raise NotImplementedError("block-diagonal projection assumes B*Cin <= 128")
    Fg = _round_up(Fa + 1, 8)     # + zero padding + trailing ones (degree) column

    # ---- tile selection: bounded VMEM, multiple pipeline steps at real N ----
    TM = max(16, min(_round_up(row_tile, 16), _round_up(N, 16)))   # rows
    Nr = _round_up(N, TM)
    TK = min(_round_up(k_tile, 128), _round_up(N, 128))            # contraction
    Nc = _round_up(N, TK)

    # Lane-dense output channels (multiple of 128), sliced back at the end.
    Cp = _round_up(Cout, 128)
    Cpb = B * Cp

    # ---- hoisted, grid-invariant preprocessing ----
    # NOTE: A is static per graph; for repeated calls, pre-pad/cast it to bf16
    # once outside jit so the wrapper does not re-stream the full matrix.
    a_p = jnp.pad(a, ((0, Nr - N), (0, Nc - N))).astype(cdt)            # (Nr, Nc)

    # Fold batch into lanes: xt[n, b*Cin + c] = x[b, n, c]; append zero pad and
    # a ones column so A @ xt also produces the row degree (no wrapper row-sum).
    xt = jnp.transpose(x, (1, 0, 2)).reshape(N, Fa)
    xt = jnp.concatenate(
        [xt, jnp.zeros((N, Fg - Fa - 1), x.dtype), jnp.ones((N, 1), x.dtype)],
        axis=1)                                                          # (N, Fg)
    xt_p = jnp.pad(xt, ((0, Nc - N), (0, 0))).astype(cdt)                # (Nc, Fg)
    xrow_p = jnp.pad(xt, ((0, Nr - N), (0, 0))).astype(cdt)              # (Nr, Fg)

    # Block-diagonal per-batch weights (batch stays in the lane dimension).
    w1 = jnp.pad(weight[:Cin], ((0, 0), (0, Cp - Cout)))                 # (Cin, Cp)
    w2 = jnp.pad(weight[Cin:], ((0, 0), (0, Cp - Cout)))                 # (Cin, Cp)
    eye_b = jnp.eye(B, dtype=weight.dtype)
    w1d = jnp.einsum("ab,co->acbo", eye_b, w1).reshape(Fa, Cpb)
    w2d = jnp.einsum("ab,co->acbo", eye_b, w2).reshape(Fa, Cpb)
    w1d = jnp.pad(w1d, ((0, Fg - Fa), (0, 0))).astype(cdt)               # (Fg, Cpb)
    w2d = jnp.pad(w2d, ((0, Fg - Fa), (0, 0))).astype(cdt)               # (Fg, Cpb)
    b_t = jnp.tile(jnp.pad(bias, (0, Cp - Cout)), (B,)).reshape(1, Cpb)
    b_t = b_t.astype(jnp.float32)

    grid = (Nr // TM, Nc // TK)

    # ---- VMEM budget (double-buffered streams + residents) with headroom ----
    vmem_est = (2 * TM * TK * 2            # A tiles (bf16, dominant stream)
                + 2 * TK * 128 * 2         # xt tiles (lane-padded bf16)
                + 2 * TM * 128 * 2         # self-row tiles
                + 2 * TM * Cpb * 4         # output tiles (f32)
                + TM * 128 * 4             # f32 accumulator scratch
                + 2 * Fg * Cpb * 2 + Cpb * 4)   # resident weights + bias
    vmem_limit = int(min(64 * 2**20, max(32 * 2**20, 2 * vmem_est)))

    cost = pl.CostEstimate(
        flops=int(2 * Nr * Nc * Fg + 4 * Nr * Fg * Cpb),
        transcendentals=int(Nr),
        bytes_accessed=int(a_p.size * 2 + xt_p.size * 2 + xrow_p.size * 2
                           + (w1d.size + w2d.size) * 2 + b_t.size * 4
                           + Nr * Cpb * 4),
    )

    out_t = pl.pallas_call(
        _sage_kernel,
        out_shape=jax.ShapeDtypeStruct((Nr, Cpb), out_dt),
        grid_spec=pltpu.PrefetchScalarGridSpec(
            num_scalar_prefetch=0,
            grid=grid,
            in_specs=[
                pl.BlockSpec((TM, TK), lambda i, k: (i, k)),     # A tile
                pl.BlockSpec((TK, Fg), lambda i, k: (k, 0)),     # folded X + ones
                pl.BlockSpec((TM, Fg), lambda i, k: (i, 0)),     # self rows (k-inv.)
                pl.BlockSpec((Fg, Cpb), lambda i, k: (0, 0)),    # blockdiag W1
                pl.BlockSpec((Fg, Cpb), lambda i, k: (0, 0)),    # blockdiag W2
                pl.BlockSpec((1, Cpb), lambda i, k: (0, 0)),     # bias
            ],
            out_specs=pl.BlockSpec((TM, Cpb), lambda i, k: (i, 0)),
            scratch_shapes=[pltpu.VMEM((TM, Fg), jnp.float32)],
        ),
        compiler_params=pltpu.CompilerParams(
            dimension_semantics=("parallel", "arbitrary"),
            vmem_limit_bytes=vmem_limit),
        cost_estimate=cost,
    )(a_p, xt_p, xrow_p, w1d, w2d, b_t)

    # Layout plumbing back to (B, N, Cout): drop row padding, un-fold the
    # batch from lanes, drop channel padding.
    out = out_t[:N].reshape(N, B, Cp)[:, :, :Cout]
    return jnp.transpose(out, (1, 0, 2)).astype(out_dt)


def sage_conv_reference(x, a, weight, bias):
    agg = jnp.einsum("nm,bmc->bnc", a, x)
    deg = jnp.clip(jnp.sum(a, axis=-1, keepdims=True), 1.0, None)
    agg = agg / deg
    cat = jnp.concatenate([x, agg], axis=-1)
    return jnp.einsum("bnc,co->bno", cat, weight) + bias


def _make_inputs(key, B, N, Cin, Cout):
    kx, ka, kw, kb = jax.random.split(key, 4)
    x = jax.random.normal(kx, (B, N, Cin), dtype=jnp.float32)
    # random 0/1 adjacency (shared across batch, as in the PyTorch module)
    a = (jax.random.uniform(ka, (N, N)) > 0.5).astype(jnp.float32)
    # deterministic parameter init mirroring reset_parameters()
    stdv = 1.0 / math.sqrt(Cout)
    weight = jax.random.uniform(kw, (2 * Cin, Cout), jnp.float32, -stdv, stdv)
    bias = jax.random.uniform(kb, (Cout,), jnp.float32, -stdv, stdv)
    return x, a, weight, bias


if __name__ == "__main__":
    key = jax.random.PRNGKey(0)
    k1, k2 = jax.random.split(key)

    conv = jax.jit(sage_conv, static_argnames=("row_tile", "k_tile"))

    # 1) Small shape from the module defaults (single grid step path).
    x, a, w, b = _make_inputs(k1, B=2, N=16, Cin=8, Cout=32)
    out = jax.block_until_ready(conv(x, a, w, b))
    ref = sage_conv_reference(x, a, w, b)
    assert out.shape == (2, 16, 32)
    err = float(jnp.max(jnp.abs(out - ref)))
    assert jnp.allclose(out, ref, atol=3e-2, rtol=3e-2), err

    # 2) Larger graph with small tiles: exercises multi-step K accumulation
    #    and multiple row tiles (pipelined / megacore-shardable path).
    x, a, w, b = _make_inputs(k2, B=2, N=192, Cin=8, Cout=32)
    out = jax.block_until_ready(conv(x, a, w, b, row_tile=64, k_tile=128))
    ref = sage_conv_reference(x, a, w, b)
    assert out.shape == (2, 192, 32)
    err = float(jnp.max(jnp.abs(out - ref)))
    assert jnp.allclose(out, ref, atol=3e-2, rtol=3e-2), err

    print("KERNEL_OK")
</pallas_src>

<mosaic_0001>
module attributes {stable_mosaic.version = 11 : i64} {
  func.func @_sage_kernel(%arg0: i32, %arg1: i32, %arg2: memref<16x128xbf16, #tpu.memory_space<vmem>>, %arg3: memref<128x24xbf16, #tpu.memory_space<vmem>>, %arg4: memref<16x24xbf16, #tpu.memory_space<vmem>>, %arg5: memref<24x256xbf16, #tpu.memory_space<vmem>>, %arg6: memref<24x256xbf16, #tpu.memory_space<vmem>>, %arg7: memref<1x256xf32, #tpu.memory_space<vmem>>, %arg8: memref<16x256xf32, #tpu.memory_space<vmem>>, %arg9: memref<16x24xf32, #tpu.memory_space<vmem>>) attributes {dimension_semantics = [#tpu.dimension_semantics<parallel>, #tpu.dimension_semantics<arbitrary>], iteration_bounds = array<i64: 1, 1>, scalar_prefetch = 0 : i64, scratch_operands = 1 : i64, tpu.core_type = #tpu.core_type<tc>, window_params = [{transform_indices = @transform_0, window_bounds = array<i64: 16, 128>}, {transform_indices = @transform_1, window_bounds = array<i64: 128, 24>}, {transform_indices = @transform_2, window_bounds = array<i64: 16, 24>}, {pipeline_mode = #tpu.pipeline_mode<synchronous>, transform_indices = @transform_3, window_bounds = array<i64: 24, 256>}, {pipeline_mode = #tpu.pipeline_mode<synchronous>, transform_indices = @transform_4, window_bounds = array<i64: 24, 256>}, {pipeline_mode = #tpu.pipeline_mode<synchronous>, transform_indices = @transform_5, window_bounds = array<i64: 1, 256>}, {transform_indices = @transform_6, window_bounds = array<i64: 16, 256>}]} {
    %c0_i32 = arith.constant 0 : i32
    %0 = arith.cmpi eq, %arg1, %c0_i32 : i32
    %1 = arith.extui %0 : i1 to i32
    %c0_i32_0 = arith.constant 0 : i32
    %2 = arith.cmpi ne, %1, %c0_i32_0 : i32
    scf.if %2 {
      %cst_10 = arith.constant 0.000000e+00 : f32
      %12 = vector.broadcast %cst_10 : f32 to vector<16x24xf32>
      %c0_11 = arith.constant 0 : index
      %c0_12 = arith.constant 0 : index
      %13 = vector.load %arg9[%c0_11, %c0_12] : memref<16x24xf32, #tpu.memory_space<vmem>>, vector<16x24xf32>
      tpu.vector_store %arg9[%c0_11, %c0_12], %12 {strides = array<i32>} : memref<16x24xf32, #tpu.memory_space<vmem>>, vector<16x24xf32>,
    } else {
    }
    %c0 = arith.constant 0 : index
    %c0_1 = arith.constant 0 : index
    %3 = vector.load %arg9[%c0, %c0_1] : memref<16x24xf32, #tpu.memory_space<vmem>>, vector<16x24xf32>
    %c0_2 = arith.constant 0 : index
    %c0_3 = arith.constant 0 : index
    %4 = vector.load %arg2[%c0_2, %c0_3] : memref<16x128xbf16, #tpu.memory_space<vmem>>, vector<16x128xbf16>
    %c0_4 = arith.constant 0 : index
    %c0_5 = arith.constant 0 : index
    %5 = vector.load %arg3[%c0_4, %c0_5] : memref<128x24xbf16, #tpu.memory_space<vmem>>, vector<128x24xbf16>
    %cst = arith.constant dense<0.000000e+00> : vector<16x24xf32>
    %6 = tpu.matmul %4, %5, %cst {dimension_numbers = #tpu.dot_dimension_numbers<[1], [0], [0], [1], [0, 0, 1, 1], [], []>} : vector<16x128xbf16>, vector<128x24xbf16>, vector<16x24xf32> -> vector<16x24xf32>
    %7 = arith.addf %3, %6 : vector<16x24xf32>
    %c0_6 = arith.constant 0 : index
    %c0_7 = arith.constant 0 : index
    %8 = vector.load %arg9[%c0_6, %c0_7] : memref<16x24xf32, #tpu.memory_space<vmem>>, vector<16x24xf32>
    tpu.vector_store %arg9[%c0_6, %c0_7], %7 {strides = array<i32>} : memref<16x24xf32, #tpu.memory_space<vmem>>, vector<16x24xf32>,
    %c0_i32_8 = arith.constant 0 : i32
    %9 = arith.cmpi eq, %arg1, %c0_i32_8 : i32
    %10 = arith.extui %9 : i1 to i32
    %c0_i32_9 = arith.constant 0 : i32
    %11 = arith.cmpi ne, %10, %c0_i32_9 : i32
    scf.if %11 {
      %c0_10 = arith.constant 0 : index
      %c0_11 = arith.constant 0 : index
      %12 = vector.load %arg9[%c0_10, %c0_11] : memref<16x24xf32, #tpu.memory_space<vmem>>, vector<16x24xf32>
      %13 = vector.extract_strided_slice %12 {offsets = [0, 23], sizes = [16, 1], strides = [1, 1]} : vector<16x24xf32> to vector<16x1xf32>
      %cst_12 = arith.constant 1.000000e+00 : f32
      %14 = vector.broadcast %cst_12 : f32 to vector<16x1xf32>
      %15 = arith.maximumf %13, %14 : vector<16x1xf32>
      %16 = tpu.reciprocal %15 {approx = true} : vector<16x1xf32> -> vector<16x1xf32>
      %17 = vector.broadcast %16 : vector<16x1xf32> to vector<16x24xf32>
      %18 = arith.mulf %12, %17 : vector<16x24xf32>
      %19 = arith.truncf %18 : vector<16x24xf32> to vector<16x24xbf16>
      %c0_13 = arith.constant 0 : index
      %c0_14 = arith.constant 0 : index
      %20 = vector.load %arg4[%c0_13, %c0_14] : memref<16x24xbf16, #tpu.memory_space<vmem>>, vector<16x24xbf16>
      %c0_15 = arith.constant 0 : index
      %c0_16 = arith.constant 0 : index
      %21 = vector.load %arg5[%c0_15, %c0_16] : memref<24x256xbf16, #tpu.memory_space<vmem>>, vector<24x256xbf16>
      %cst_17 = arith.constant dense<0.000000e+00> : vector<16x256xf32>
      %22 = tpu.matmul %20, %21, %cst_17 {dimension_numbers = #tpu.dot_dimension_numbers<[1], [0], [0], [1], [0, 0, 1, 1], [], []>} : vector<16x24xbf16>, vector<24x256xbf16>, vector<16x256xf32> -> vector<16x256xf32>
      %c0_18 = arith.constant 0 : index
      %c0_19 = arith.constant 0 : index
      %23 = vector.load %arg6[%c0_18, %c0_19] : memref<24x256xbf16, #tpu.memory_space<vmem>>, vector<24x256xbf16>
      %cst_20 = arith.constant dense<0.000000e+00> : vector<16x256xf32>
      %24 = tpu.matmul %19, %23, %cst_20 {dimension_numbers = #tpu.dot_dimension_numbers<[1], [0], [0], [1], [0, 0, 1, 1], [], []>} : vector<16x24xbf16>, vector<24x256xbf16>, vector<16x256xf32> -> vector<16x256xf32>
      %25 = arith.addf %22, %24 : vector<16x256xf32>
      %c0_21 = arith.constant 0 : index
      %c0_22 = arith.constant 0 : index
      %26 = vector.load %arg7[%c0_21, %c0_22] : memref<1x256xf32, #tpu.memory_space<vmem>>, vector<1x256xf32>
      %27 = vector.broadcast %26 : vector<1x256xf32> to vector<16x256xf32>
      %28 = arith.addf %25, %27 : vector<16x256xf32>
      %c0_23 = arith.constant 0 : index
      %c0_24 = arith.constant 0 : index
      %29 = vector.load %arg8[%c0_23, %c0_24] : memref<16x256xf32, #tpu.memory_space<vmem>>, vector<16x256xf32>
      tpu.vector_store %arg8[%c0_23, %c0_24], %28 {strides = array<i32>} : memref<16x256xf32, #tpu.memory_space<vmem>>, vector<16x256xf32>,
    } else {
    }
    return
  }
  func.func @transform_0(%arg0: i32, %arg1: i32) -> (i32, i32) {
    %c0_i32 = arith.constant 0 : i32
    return %arg0, %arg1 : i32, i32
  }
  func.func @transform_1(%arg0: i32, %arg1: i32) -> (i32, i32) {
    %c0_i32 = arith.constant 0 : i32
    %c0_i32_0 = arith.constant 0 : i32
    return %arg1, %c0_i32 : i32, i32
  }
  func.func @transform_2(%arg0: i32, %arg1: i32) -> (i32, i32) {
    %c0_i32 = arith.constant 0 : i32
    %c0_i32_0 = arith.constant 0 : i32
    return %arg0, %c0_i32 : i32, i32
  }
  func.func @transform_3(%arg0: i32, %arg1: i32) -> (i32, i32) {
    %c0_i32 = arith.constant 0 : i32
    %c0_i32_0 = arith.constant 0 : i32
    %c0_i32_1 = arith.constant 0 : i32
    return %c0_i32, %c0_i32_0 : i32, i32
  }
  func.func @transform_4(%arg0: i32, %arg1: i32) -> (i32, i32) {
    %c0_i32 = arith.constant 0 : i32
    %c0_i32_0 = arith.constant 0 : i32
    %c0_i32_1 = arith.constant 0 : i32
    return %c0_i32, %c0_i32_0 : i32, i32
  }
  func.func @transform_5(%arg0: i32, %arg1: i32) -> (i32, i32) {
    %c0_i32 = arith.constant 0 : i32
    %c0_i32_0 = arith.constant 0 : i32
    %c0_i32_1 = arith.constant 0 : i32
    return %c0_i32, %c0_i32_0 : i32, i32
  }
  func.func @transform_6(%arg0: i32, %arg1: i32) -> (i32, i32) {
    %c0_i32 = arith.constant 0 : i32
    %c0_i32_0 = arith.constant 0 : i32
    return %arg0, %c0_i32 : i32, i32
  }
}

</mosaic_0001>

<llo_original>
// kernel: tile.8
$region0: #{tile.8}
  #allocation0 [shape = 's32[1]{0}', space=sflag, size = 0x4, scoped, tag = 'scoped memory for tile.8']
  %s0 = inlined_call_operand.vmem [shape: f32[128], index: 0, kind: input, shape index: {}]
  %s1 = inlined_call_operand.vmem [shape: f32[2,128], index: 1, kind: output, shape index: {}]
  // Predicated region
  $region2: #{tile.8} parent=0 // pred_check
    _
  $region3: #{tile.8} parent=0 // pred_check_branch
    %3 = sbr.rel (0) target = $region5
  $region4: #{tile.8} parent=0 // pred_region
    _
  $region5: #{tile.8} parent=0 // pred_fallthru
    _
  %v4 = vld [vmem:[%s0] ss:$0 sm:$0xff]
  %5 = vst [vmem:[%s1] sm:$0x3] %v4

// kernel: sage_conv.1
$region0: #{sage_conv.1}
  #allocation0 [shape = 'u32[]', space=smem, size = 0x4, offset = 0x4, fixed_abs, tag = 'smem constant byte address 0x4 - core index']
  #allocation1 [shape = 'u32[72,128]{1,0:T(1,128)}', space=vmem, size = 0x9000, scoped, tag = 'internal scratch']
  #allocation2 [shape = 'f32[16,24]{1,0:T(8,128)}', space=vmem, size = 0x2000, scoped, tag = 'scratch operand']
  %s0 = inlined_call_operand.vmem [shape: bf16[16,128], index: 0, kind: input, shape index: {}]
  %s1 = inlined_call_operand.vmem [shape: bf16[128,24], index: 1, kind: input, shape index: {}]
  %s2 = inlined_call_operand.vmem [shape: bf16[16,24], index: 2, kind: input, shape index: {}]
  %s3 = inlined_call_operand.vmem [shape: bf16[24,256], index: 3, kind: input, shape index: {}]
  %s4 = inlined_call_operand.vmem [shape: bf16[24,256], index: 4, kind: input, shape index: {}]
  %s5 = inlined_call_operand.vmem [shape: f32[1,256], index: 5, kind: input, shape index: {}]
  %s6 = inlined_call_operand.vmem [shape: f32[16,256], index: 6, kind: output, shape index: {}]
  %s7 = sld [smem:[#allocation0]]
  $region42: #{sage_conv.1} parent=0
    _
  %s9 = ssub.s32 1, %s7
  %s10 = scalar_select 0, %s9, %s7
  // Predicated region
  $region2: #{sage_conv.1} parent=0 // pred_check
    _
  $region3: #{sage_conv.1} parent=0 // pred_check_branch
    %12 = sbr.rel (0) target = $region5
  $region4: #{sage_conv.1} parent=0 // pred_region
    _
  $region5: #{sage_conv.1} parent=0 // pred_fallthru
    _
  // Predicated region
  $region6: #{sage_conv.1} parent=0 // pred_check
    _
  $region7: #{sage_conv.1} parent=0 // pred_check_branch
    %14 = sbr.rel (0) target = $region9
  $region8: #{sage_conv.1} parent=0 // pred_region
    _
  $region9: #{sage_conv.1} parent=0 // pred_fallthru
    _
  // Predicated region
  $region10: #{sage_conv.1} parent=0 // pred_check
    _
  $region11: #{sage_conv.1} parent=0 // pred_check_branch
    %16 = sbr.rel (0) target = $region13
  $region12: #{sage_conv.1} parent=0 // pred_region
    _
  $region13: #{sage_conv.1} parent=0 // pred_fallthru
    _
  // Predicated region
  $region14: #{sage_conv.1} parent=0 // pred_check
    _
  $region15: #{sage_conv.1} parent=0 // pred_check_branch
    %18 = sbr.rel (0) target = $region17
  $region16: #{sage_conv.1} parent=0 // pred_region
    _
  $region17: #{sage_conv.1} parent=0 // pred_fallthru
    _
  // Predicated region
  $region18: #{sage_conv.1} parent=0 // pred_check
    _
  $region19: #{sage_conv.1} parent=0 // pred_check_branch
    %20 = sbr.rel (0) target = $region21
  $region20: #{sage_conv.1} parent=0 // pred_region
    _
  $region21: #{sage_conv.1} parent=0 // pred_fallthru
    _
  // Predicated region
  $region22: #{sage_conv.1} parent=0 // pred_check
    _
  $region23: #{sage_conv.1} parent=0 // pred_check_branch
    %22 = sbr.rel (0) target = $region25
  $region24: #{sage_conv.1} parent=0 // pred_region
    _
  $region25: #{sage_conv.1} parent=0 // pred_fallthru
    _
  %p24 = scmp.eq.s32.totalorder 0, 0
  // Predicated region
  $region26: #{sage_conv.1} parent=0 // pred_check
    %p25 = pneg %p24
  $region27: #{sage_conv.1} parent=0 // pred_check_branch
    %27 = sbr.rel (%p25) target = $region29
  $region28: #{sage_conv.1} parent=0 // pred_region
    %vm28 = vcmask 195584
    %29 = vst.msk [vmem:[#allocation2] sm:$0xff] %vm28, 0.0
    %30 = vst.msk [vmem:[#allocation2 + $0x8] sm:$0xff] %vm28, 0.0
  $region29: #{sage_conv.1} parent=0 // pred_fallthru
    _
  %v31 = vld [vmem:[#allocation2] sm:$0xff]
  %v32 = vld [vmem:[#allocation2 + $0x8] sm:$0xff]
  %v33 = vld [vmem:[%s0] sm:$0xf]
  %v34 = vld [vmem:[%s0 + $0x4] sm:$0xf]
  %v35 = vld [vmem:[%s1] sm:$0xf]
  %v36 = vld [vmem:[%s1 + $0x4] sm:$0xf]
  %v37 = vld [vmem:[%s1 + $0x8] sm:$0xf]
  %v38 = vld [vmem:[%s1 + $0xc] sm:$0xf]
  %v39 = vld [vmem:[%s1 + $0x10] sm:$0xf]
  %v40 = vld [vmem:[%s1 + $0x14] sm:$0xf]
  %v41 = vld [vmem:[%s1 + $0x18] sm:$0xf]
  %v42 = vld [vmem:[%s1 + $0x1c] sm:$0xf]
  %v43 = vld [vmem:[%s1 + $0x20] sm:$0xf]
  %v44 = vld [vmem:[%s1 + $0x24] sm:$0xf]
  %v45 = vld [vmem:[%s1 + $0x28] sm:$0xf]
  %v46 = vld [vmem:[%s1 + $0x2c] sm:$0xf]
  %v47 = vld [vmem:[%s1 + $0x30] sm:$0xf]
  %v48 = vld [vmem:[%s1 + $0x34] sm:$0xf]
  %v49 = vld [vmem:[%s1 + $0x38] sm:$0xf]
  %v50 = vld [vmem:[%s1 + $0x3c] sm:$0xf]
  %v53 = vunpack.c.l.b16 %v33
  %v54 = vunpack.c.l.b16 %v34
  %v55 = vpack.c.b16 %v54, %v53
  %v73 = vunpack.c.l.b16 %v35
  %v74 = vunpack.c.l.b16 %v36
  %v75 = vunpack.c.l.b16 %v37
  %v76 = vunpack.c.l.b16 %v38
  %v77 = vunpack.c.l.b16 %v39
  %v78 = vunpack.c.l.b16 %v40
  %v79 = vunpack.c.l.b16 %v41
  %v80 = vunpack.c.l.b16 %v42
  %v81 = vunpack.c.l.b16 %v43
  %v82 = vunpack.c.l.b16 %v44
  %v83 = vunpack.c.l.b16 %v45
  %v84 = vunpack.c.l.b16 %v46
  %v85 = vunpack.c.l.b16 %v47
  %v86 = vunpack.c.l.b16 %v48
  %v87 = vunpack.c.l.b16 %v49
  %v88 = vunpack.c.l.b16 %v50
  %v89 = vpack.c.b16 %v74, %v73
  %v90 = vpack.c.b16 %v76, %v75
  %v91 = vpack.c.b16 %v78, %v77
  %v92 = vpack.c.b16 %v80, %v79
  %v93 = vpack.c.b16 %v82, %v81
  %v94 = vpack.c.b16 %v84, %v83
  %v95 = vpack.c.b16 %v86, %v85
  %v96 = vpack.c.b16 %v88, %v87
  %105 = vmatpush.bf16.msra.mxu0 %v96
  %106 = vmatpush.bf16.msra.mxu0 %v95
  %107 = vmatpush.bf16.msra.mxu0 %v94
  %108 = vmatpush.bf16.msra.mxu0 %v93
  %109 = vmatpush.bf16.msra.mxu0 %v92
  %110 = vmatpush.bf16.msra.mxu0 %v91
  %111 = vmatpush.bf16.msra.mxu0 %v90
  %112 = vmatpush.bf16.msra.mxu0 %v89
  %113 = vmatmul.bf16.gmra.mxu0 %v55
  %v114 = vpop.f32.mrf.mxu0
  %v115 = vadd.f32 0.0, %v114
  %v116 = vpop.f32.mrf.mxu0
  %v117 = vadd.f32 0.0, %v116
  %118 = vdwg.mxu0
  %v119 = vadd.f32 %v31, %v115
  %v120 = vadd.f32 %v32, %v117
  %vm121 = vcmask 195584
  %122 = vst.msk [vmem:[#allocation2] sm:$0xff] %vm121, %v119
  %123 = vst.msk [vmem:[#allocation2 + $0x8] sm:$0xff] %vm121, %v120
  // Predicated region
  $region30: #{sage_conv.1} parent=0 // pred_check
    %p124 = pneg %p24
  $region31: #{sage_conv.1} parent=0 // pred_check_branch
    %126 = sbr.rel (%p124) target = $region33
  $region32: #{sage_conv.1} parent=0 // pred_region
    %v127 = vld [vmem:[#allocation2] sm:$0xff]
    %v128 = vld [vmem:[#allocation2 + $0x8] sm:$0xff]
    %v129 = vmax.f32 %v127, 1.0
    %v130 = vmax.f32 %v128, 1.0
    %v131 = vrcp.pop %v129
    %v132 = vrcp.pop %v130
    %134 = vset.pattern.permute.xlu0 23
    %135 = vperm.xlu0 %134, %v131
    %v136 = vpop.permute.xlu0 %135
    %139 = vset.pattern.permute.xlu0 23
    %140 = vperm.xlu0 %139, %v132
    %v141 = vpop.permute.xlu0 %140
    %v143 = vmul.f32 %v127, %v136
    %v144 = vmul.f32 %v128, %v141
    %v145 = vpack.c.bf16 %v144, %v143
    %v146 = vld [vmem:[%s2] sm:$0xf]
    %v147 = vld [vmem:[%s2 + $0x4] sm:$0xf]
    %v148 = vld [vmem:[%s3] sm:$0xff]
    %v149 = vld [vmem:[%s3 + $0x8] sm:$0xff]
    %v150 = vld [vmem:[%s3 + $0x10] sm:$0xff]
    %v151 = vld [vmem:[%s4] sm:$0xff]
    %v152 = vld [vmem:[%s4 + $0x8] sm:$0xff]
    %v153 = vld [vmem:[%s4 + $0x10] sm:$0xff]
    %v157 = vunpack.c.l.b16 %v151
    %v158 = vunpack.c.h.b16 %v151
    %v159 = vunpack.c.l.b16 %v152
    %v160 = vunpack.c.h.b16 %v152
    %v161 = vunpack.c.l.b16 %v153
    %v162 = vunpack.c.h.b16 %v153
    %v163 = vpack.c.b16 %v159, %v157
    %v164 = vpack.c.b16 %v160, %v158
    %v165 = vpack.c.b16 %v161, %v161
    %v166 = vpack.c.b16 %v162, %v162
    %v170 = vsel %vm121, %v145, 0
    %vm172 = vcmask 1043456
    %v174 = vsel %vm172, %v165, 0
    %v177 = vsel %vm172, %v166, 0
    %179 = vmatpush.bf16.msra.mxu0 0
    %180 = vmatpush.bf16.msra.mxu0 0
    %181 = vmatpush.bf16.msra.mxu0 0
    %182 = vmatpush.bf16.msra.mxu0 0
    %183 = vmatpush.bf16.msra.mxu0 0
    %184 = vmatpush.bf16.msra.mxu0 0
    %185 = vmatpush.bf16.msra.mxu0 %v174
    %186 = vmatpush.bf16.msra.mxu0 %v163
    %187 = vmatmul.bf16.gmra.mxu0 %v170
    %v188 = vpop.f32.mrf.mxu0
    %v189 = vadd.f32 0.0, %v188
    %v190 = vpop.f32.mrf.mxu0
    %v191 = vadd.f32 0.0, %v190
    %192 = vdwg.mxu0
    %193 = vmatpush.bf16.msra.mxu0 0
    %194 = vmatpush.bf16.msra.mxu0 0
    %195 = vmatpush.bf16.msra.mxu0 0
    %196 = vmatpush.bf16.msra.mxu0 0
    %197 = vmatpush.bf16.msra.mxu0 0
    %198 = vmatpush.bf16.msra.mxu0 0
    %199 = vmatpush.bf16.msra.mxu0 %v177
    %200 = vmatpush.bf16.msra.mxu0 %v164
    %201 = vmatmul.bf16.gmra.mxu0 %v170
    %v202 = vpop.f32.mrf.mxu0
    %v203 = vadd.f32 0.0, %v202
    %v204 = vpop.f32.mrf.mxu0
    %v205 = vadd.f32 0.0, %v204
    %206 = vdwg.mxu0
    %v209 = vunpack.c.l.b16 %v146
    %v210 = vunpack.c.l.b16 %v147
    %v211 = vpack.c.b16 %v210, %v209
    %v215 = vunpack.c.l.b16 %v148
    %v216 = vunpack.c.h.b16 %v148
    %v217 = vunpack.c.l.b16 %v149
    %v218 = vunpack.c.h.b16 %v149
    %v219 = vunpack.c.l.b16 %v150
    %v220 = vunpack.c.h.b16 %v150
    %v221 = vpack.c.b16 %v217, %v215
    %v222 = vpack.c.b16 %v218, %v216
    %v223 = vpack.c.b16 %v219, %v219
    %v224 = vpack.c.b16 %v220, %v220
    %v228 = vsel %vm121, %v211, 0
    %v231 = vsel %vm172, %v223, 0
    %v234 = vsel %vm172, %v224, 0
    %236 = vmatpush.bf16.msra.mxu0 0
    %237 = vmatpush.bf16.msra.mxu0 0
    %238 = vmatpush.bf16.msra.mxu0 0
    %239 = vmatpush.bf16.msra.mxu0 0
    %240 = vmatpush.bf16.msra.mxu0 0
    %241 = vmatpush.bf16.msra.mxu0 0
    %242 = vmatpush.bf16.msra.mxu0 %v231
    %243 = vmatpush.bf16.msra.mxu0 %v221
    %244 = vmatmul.bf16.gmra.mxu0 %v228
    %v245 = vpop.f32.mrf.mxu0
    %v246 = vadd.f32 %v189, %v245
    %v247 = vpop.f32.mrf.mxu0
    %v248 = vadd.f32 %v191, %v247
    %249 = vdwg.mxu0
    %250 = vmatpush.bf16.msra.mxu0 0
    %251 = vmatpush.bf16.msra.mxu0 0
    %252 = vmatpush.bf16.msra.mxu0 0
    %253 = vmatpush.bf16.msra.mxu0 0
    %254 = vmatpush.bf16.msra.mxu0 0
    %255 = vmatpush.bf16.msra.mxu0 0
    %256 = vmatpush.bf16.msra.mxu0 %v234
    %257 = vmatpush.bf16.msra.mxu0 %v222
    %258 = vmatmul.bf16.gmra.mxu0 %v228
    %v259 = vpop.f32.mrf.mxu0
    %v260 = vadd.f32 %v203, %v259
    %v261 = vpop.f32.mrf.mxu0
    %v262 = vadd.f32 %v205, %v261
    %263 = vdwg.mxu0
    %v264 = vld [vmem:[%s5] sm:$0x3]
    %v266 = vperm.slane %v264, 0
    %v267 = vperm.slane %v264, 1
    %v270 = vadd.f32 %v246, %v266
    %v271 = vadd.f32 %v260, %v267
    %v272 = vadd.f32 %v248, %v266
    %v273 = vadd.f32 %v262, %v267
    %274 = vst [vmem:[%s6] sm:$0xff] %v270
    %275 = vst [vmem:[%s6 + $0x8] sm:$0xff] %v271
    %276 = vst [vmem:[%s6 + $0x10] sm:$0xff] %v272
    %277 = vst [vmem:[%s6 + $0x18] sm:$0xff] %v273
  $region33: #{sage_conv.1} parent=0 // pred_fallthru
    _
  // Predicated region
  $region34: #{sage_conv.1} parent=0 // pred_check
    _
  $region35: #{sage_conv.1} parent=0 // pred_check_branch
    %279 = sbr.rel (0) target = $region37
  $region36: #{sage_conv.1} parent=0 // pred_region
    _
  $region37: #{sage_conv.1} parent=0 // pred_fallthru
    _
  // Predicated region
  $region38: #{sage_conv.1} parent=0 // pred_check
    _
  $region39: #{sage_conv.1} parent=0 // pred_check_branch
    %281 = sbr.rel (0) target = $region41
  $region40: #{sage_conv.1} parent=0 // pred_region
    _
  $region41: #{sage_conv.1} parent=0 // pred_fallthru
    _

</llo_original>
